<compile_context>
chip_gen: v5e
topology: v5e:2x2
jax: 0.10.0
libtpu: 0.0.40
codegen_flags: <defaults>
</compile_context>

<pallas_src>
import jax
import jax.numpy as jnp
from jax.experimental import pallas as pl
from jax.experimental.pallas import tpu as pltpu


def _realnvp_kernel(x0_ref, x1_ref, w1_ref, b1_ref, w2_ref, b2_ref,
                    ws_ref, bs_ref, wt_ref, bt_ref, o_ref):
    wdt = w1_ref.dtype                     # matmul operand dtype (f32 or bf16)
    x0 = x0_ref[...]                       # (TB, d)
    x1 = x1_ref[...]                       # (TB, d)
    d = x0.shape[-1]

    # MLP hot path: four lane-dense matmuls on the MXU, f32 accumulation.
    h = jnp.dot(x0, w1_ref[...], preferred_element_type=jnp.float32) + b1_ref[...]
    h = jnp.maximum(h, 0.0).astype(wdt)
    h = jnp.dot(h, w2_ref[...], preferred_element_type=jnp.float32) + b2_ref[...]
    h = jnp.maximum(h, 0.0).astype(wdt)

    s = jnp.dot(h, ws_ref[...], preferred_element_type=jnp.float32) + bs_ref[...]
    t = jnp.dot(h, wt_ref[...], preferred_element_type=jnp.float32) + bt_ref[...]

    # Epilogue in f32 on the VPU/EUP.
    s = 0.1 * jnp.tanh(s)
    y_left = x1.astype(jnp.float32) * jnp.exp(s) + t

    # Two direct stores instead of a concat (both aligned when d % 128 == 0).
    o_ref[:, :d] = y_left.astype(o_ref.dtype)
    o_ref[:, d:] = x0.astype(o_ref.dtype)


def realnvp_forward(x, params, *, block_batch=512, matmul_dtype=None):
    """x: (B, C); params holds pre-transposed weights (in,out) and (1,out) biases.

    block_batch: batch tile (rounded to B when B is small); 512 keeps
      2x(double-buffered) input/output tiles + resident weights well inside the
      default scoped VMEM even on v7x (64 MiB physical).
    matmul_dtype: e.g. jnp.bfloat16 to halve HBM traffic for the matmul
      operands; accumulation / tanh / exp stay in f32.
    """
    B, C = x.shape
    assert C % 2 == 0, "Should have even dims"
    d = C // 2
    out_dtype = x.dtype

    w1, b1, w2, b2, w3, b3 = (params[k] for k in ("w1", "b1", "w2", "b2", "w3", "b3"))

    # Split feature halves and the final layer in the wrapper so all kernel
    # accesses are lane-dense (no lane-offset slices inside the kernel).
    x0, x1 = x[:, :d], x[:, d:]
    ws, wt = w3[:, :d], w3[:, d:]
    bs, bt = b3[:, :d], b3[:, d:]

    if matmul_dtype is not None:
        x0 = x0.astype(matmul_dtype)
        x1 = x1.astype(matmul_dtype)
        w1 = w1.astype(matmul_dtype)
        w2 = w2.astype(matmul_dtype)
        ws = ws.astype(matmul_dtype)
        wt = wt.astype(matmul_dtype)
    # Biases stay f32 (added to f32 accumulators).
    b1 = b1.astype(jnp.float32)
    b2 = b2.astype(jnp.float32)
    bs = bs.astype(jnp.float32)
    bt = bt.astype(jnp.float32)

    tb = min(B, block_batch)
    grid = (pl.cdiv(B, tb),)

    def batch_spec(cols):
        return pl.BlockSpec((tb, cols), lambda i: (i, 0))

    def resident(shape):
        # Constant index_map -> weight/bias tiles stay VMEM-resident across
        # the batch grid (no re-DMA per step).
        return pl.BlockSpec(shape, lambda i: (0, 0))

    return pl.pallas_call(
        _realnvp_kernel,
        out_shape=jax.ShapeDtypeStruct((B, C), out_dtype),
        grid_spec=pltpu.PrefetchScalarGridSpec(
            num_scalar_prefetch=0,
            grid=grid,
            in_specs=[
                batch_spec(d),          # x0
                batch_spec(d),          # x1
                resident((d, d)),       # w1
                resident((1, d)),       # b1
                resident((d, d)),       # w2
                resident((1, d)),       # b2
                resident((d, d)),       # ws (scale half of W3)
                resident((1, d)),       # bs
                resident((d, d)),       # wt (translation half of W3)
                resident((1, d)),       # bt
            ],
            out_specs=batch_spec(C),
        ),
        compiler_params=pltpu.CompilerParams(
            dimension_semantics=("parallel",),  # megacore sharding on v7x
        ),
    )(x0, x1, w1, b1, w2, b2, ws, bs, wt, bt)


def init_params(key, in_channels):
    """Deterministic init matching the PyTorch module's layer shapes.
    nn.Linear weight (out, in) is stored transposed as (in, out); biases as (1, out)."""
    d = in_channels // 2
    k1, k2, k3, k4, k5, k6 = jax.random.split(key, 6)
    scale = 0.1
    return {
        "w1": scale * jax.random.normal(k1, (d, d), jnp.float32),
        "b1": scale * jax.random.normal(k2, (1, d), jnp.float32),
        "w2": scale * jax.random.normal(k3, (d, d), jnp.float32),
        "b2": scale * jax.random.normal(k4, (1, d), jnp.float32),
        "w3": scale * jax.random.normal(k5, (d, in_channels), jnp.float32),
        "b3": scale * jax.random.normal(k6, (1, in_channels), jnp.float32),
    }


def realnvp_reference(x, params):
    """Pure-JAX reference for correctness checking."""
    d = x.shape[-1] // 2
    x0, x1 = x[:, :d], x[:, d:]
    h = jnp.maximum(x0 @ params["w1"] + params["b1"], 0.0)
    h = jnp.maximum(h @ params["w2"] + params["b2"], 0.0)
    st = h @ params["w3"] + params["b3"]
    s = 0.1 * jnp.tanh(st[:, :d])
    t = st[:, d:]
    return jnp.concatenate([x1 * jnp.exp(s) + t, x0], axis=-1)


if __name__ == "__main__":
    B, C = 16, 8  # small: batch=16, in_channels=8 (even, as the module requires)
    key = jax.random.PRNGKey(0)
    kx, kp = jax.random.split(key)
    x = jax.random.normal(kx, (B, C), jnp.float32)
    params = init_params(kp, C)

    # block_batch=8 -> grid of 2 batch tiles, exercising the pipelined path.
    y = realnvp_forward(x, params, block_batch=8)
    y = jax.block_until_ready(y)

    y_ref = realnvp_reference(x, params)
    assert y.shape == (B, C)
    assert jnp.allclose(y, y_ref, atol=1e-5, rtol=1e-5), "mismatch vs reference"

    print("KERNEL_OK")
</pallas_src>

<mosaic_0001>
module attributes {stable_mosaic.version = 11 : i64} {
  func.func @_realnvp_kernel(%arg0: i32, %arg1: memref<8x4xf32, #tpu.memory_space<vmem>>, %arg2: memref<8x4xf32, #tpu.memory_space<vmem>>, %arg3: memref<4x4xf32, #tpu.memory_space<vmem>>, %arg4: memref<1x4xf32, #tpu.memory_space<vmem>>, %arg5: memref<4x4xf32, #tpu.memory_space<vmem>>, %arg6: memref<1x4xf32, #tpu.memory_space<vmem>>, %arg7: memref<4x4xf32, #tpu.memory_space<vmem>>, %arg8: memref<1x4xf32, #tpu.memory_space<vmem>>, %arg9: memref<4x4xf32, #tpu.memory_space<vmem>>, %arg10: memref<1x4xf32, #tpu.memory_space<vmem>>, %arg11: memref<8x8xf32, #tpu.memory_space<vmem>>) attributes {dimension_semantics = [#tpu.dimension_semantics<parallel>], iteration_bounds = array<i64: 2>, scalar_prefetch = 0 : i64, scratch_operands = 0 : i64, tpu.core_type = #tpu.core_type<tc>, window_params = [{transform_indices = @transform_0, window_bounds = array<i64: 8, 4>}, {transform_indices = @transform_1, window_bounds = array<i64: 8, 4>}, {pipeline_mode = #tpu.pipeline_mode<synchronous>, transform_indices = @transform_2, window_bounds = array<i64: 4, 4>}, {pipeline_mode = #tpu.pipeline_mode<synchronous>, transform_indices = @transform_3, window_bounds = array<i64: 1, 4>}, {pipeline_mode = #tpu.pipeline_mode<synchronous>, transform_indices = @transform_4, window_bounds = array<i64: 4, 4>}, {pipeline_mode = #tpu.pipeline_mode<synchronous>, transform_indices = @transform_5, window_bounds = array<i64: 1, 4>}, {pipeline_mode = #tpu.pipeline_mode<synchronous>, transform_indices = @transform_6, window_bounds = array<i64: 4, 4>}, {pipeline_mode = #tpu.pipeline_mode<synchronous>, transform_indices = @transform_7, window_bounds = array<i64: 1, 4>}, {pipeline_mode = #tpu.pipeline_mode<synchronous>, transform_indices = @transform_8, window_bounds = array<i64: 4, 4>}, {pipeline_mode = #tpu.pipeline_mode<synchronous>, transform_indices = @transform_9, window_bounds = array<i64: 1, 4>}, {transform_indices = @transform_10, window_bounds = array<i64: 8, 8>}]} {
    %c0 = arith.constant 0 : index
    %c0_0 = arith.constant 0 : index
    %0 = vector.load %arg1[%c0, %c0_0] : memref<8x4xf32, #tpu.memory_space<vmem>>, vector<8x4xf32>
    %c0_1 = arith.constant 0 : index
    %c0_2 = arith.constant 0 : index
    %1 = vector.load %arg2[%c0_1, %c0_2] : memref<8x4xf32, #tpu.memory_space<vmem>>, vector<8x4xf32>
    %c0_3 = arith.constant 0 : index
    %c0_4 = arith.constant 0 : index
    %2 = vector.load %arg3[%c0_3, %c0_4] : memref<4x4xf32, #tpu.memory_space<vmem>>, vector<4x4xf32>
    %cst = arith.constant dense<0.000000e+00> : vector<8x4xf32>
    %3 = tpu.matmul %0, %2, %cst {dimension_numbers = #tpu.dot_dimension_numbers<[1], [0], [0], [1], [0, 0, 1, 1], [], []>} : vector<8x4xf32>, vector<4x4xf32>, vector<8x4xf32> -> vector<8x4xf32>
    %c0_5 = arith.constant 0 : index
    %c0_6 = arith.constant 0 : index
    %4 = vector.load %arg4[%c0_5, %c0_6] : memref<1x4xf32, #tpu.memory_space<vmem>>, vector<1x4xf32>
    %5 = vector.broadcast %4 : vector<1x4xf32> to vector<8x4xf32>
    %6 = arith.addf %3, %5 : vector<8x4xf32>
    %cst_7 = arith.constant 0.000000e+00 : f32
    %7 = vector.broadcast %cst_7 : f32 to vector<8x4xf32>
    %8 = arith.maximumf %6, %7 : vector<8x4xf32>
    %c0_8 = arith.constant 0 : index
    %c0_9 = arith.constant 0 : index
    %9 = vector.load %arg5[%c0_8, %c0_9] : memref<4x4xf32, #tpu.memory_space<vmem>>, vector<4x4xf32>
    %cst_10 = arith.constant dense<0.000000e+00> : vector<8x4xf32>
    %10 = tpu.matmul %8, %9, %cst_10 {dimension_numbers = #tpu.dot_dimension_numbers<[1], [0], [0], [1], [0, 0, 1, 1], [], []>} : vector<8x4xf32>, vector<4x4xf32>, vector<8x4xf32> -> vector<8x4xf32>
    %c0_11 = arith.constant 0 : index
    %c0_12 = arith.constant 0 : index
    %11 = vector.load %arg6[%c0_11, %c0_12] : memref<1x4xf32, #tpu.memory_space<vmem>>, vector<1x4xf32>
    %12 = vector.broadcast %11 : vector<1x4xf32> to vector<8x4xf32>
    %13 = arith.addf %10, %12 : vector<8x4xf32>
    %cst_13 = arith.constant 0.000000e+00 : f32
    %14 = vector.broadcast %cst_13 : f32 to vector<8x4xf32>
    %15 = arith.maximumf %13, %14 : vector<8x4xf32>
    %c0_14 = arith.constant 0 : index
    %c0_15 = arith.constant 0 : index
    %16 = vector.load %arg7[%c0_14, %c0_15] : memref<4x4xf32, #tpu.memory_space<vmem>>, vector<4x4xf32>
    %cst_16 = arith.constant dense<0.000000e+00> : vector<8x4xf32>
    %17 = tpu.matmul %15, %16, %cst_16 {dimension_numbers = #tpu.dot_dimension_numbers<[1], [0], [0], [1], [0, 0, 1, 1], [], []>} : vector<8x4xf32>, vector<4x4xf32>, vector<8x4xf32> -> vector<8x4xf32>
    %c0_17 = arith.constant 0 : index
    %c0_18 = arith.constant 0 : index
    %18 = vector.load %arg8[%c0_17, %c0_18] : memref<1x4xf32, #tpu.memory_space<vmem>>, vector<1x4xf32>
    %19 = vector.broadcast %18 : vector<1x4xf32> to vector<8x4xf32>
    %20 = arith.addf %17, %19 : vector<8x4xf32>
    %c0_19 = arith.constant 0 : index
    %c0_20 = arith.constant 0 : index
    %21 = vector.load %arg9[%c0_19, %c0_20] : memref<4x4xf32, #tpu.memory_space<vmem>>, vector<4x4xf32>
    %cst_21 = arith.constant dense<0.000000e+00> : vector<8x4xf32>
    %22 = tpu.matmul %15, %21, %cst_21 {dimension_numbers = #tpu.dot_dimension_numbers<[1], [0], [0], [1], [0, 0, 1, 1], [], []>} : vector<8x4xf32>, vector<4x4xf32>, vector<8x4xf32> -> vector<8x4xf32>
    %c0_22 = arith.constant 0 : index
    %c0_23 = arith.constant 0 : index
    %23 = vector.load %arg10[%c0_22, %c0_23] : memref<1x4xf32, #tpu.memory_space<vmem>>, vector<1x4xf32>
    %24 = vector.broadcast %23 : vector<1x4xf32> to vector<8x4xf32>
    %25 = arith.addf %22, %24 : vector<8x4xf32>
    %26 = math.tanh %20 : vector<8x4xf32>
    %cst_24 = arith.constant 1.000000e-01 : f32
    %27 = vector.broadcast %cst_24 : f32 to vector<8x4xf32>
    %28 = arith.mulf %27, %26 : vector<8x4xf32>
    %29 = math.exp %28 : vector<8x4xf32>
    %30 = arith.mulf %1, %29 : vector<8x4xf32>
    %31 = arith.addf %30, %25 : vector<8x4xf32>
    %c0_25 = arith.constant 0 : index
    %c0_26 = arith.constant 0 : index
    %32 = vector.load %arg11[%c0_25, %c0_26] : memref<8x8xf32, #tpu.memory_space<vmem>>, vector<8x4xf32>
    tpu.vector_store %arg11[%c0_25, %c0_26], %31 {strides = array<i32>} : memref<8x8xf32, #tpu.memory_space<vmem>>, vector<8x4xf32>,
    %c0_27 = arith.constant 0 : index
    %c4 = arith.constant 4 : index
    %33 = vector.load %arg11[%c0_27, %c4] : memref<8x8xf32, #tpu.memory_space<vmem>>, vector<8x4xf32>
    tpu.vector_store %arg11[%c0_27, %c4], %0 {strides = array<i32>} : memref<8x8xf32, #tpu.memory_space<vmem>>, vector<8x4xf32>,
    return
  }
  func.func @transform_0(%arg0: i32) -> (i32, i32) {
    %c0_i32 = arith.constant 0 : i32
    %c0_i32_0 = arith.constant 0 : i32
    return %arg0, %c0_i32 : i32, i32
  }
  func.func @transform_1(%arg0: i32) -> (i32, i32) {
    %c0_i32 = arith.constant 0 : i32
    %c0_i32_0 = arith.constant 0 : i32
    return %arg0, %c0_i32 : i32, i32
  }
  func.func @transform_2(%arg0: i32) -> (i32, i32) {
    %c0_i32 = arith.constant 0 : i32
    %c0_i32_0 = arith.constant 0 : i32
    %c0_i32_1 = arith.constant 0 : i32
    return %c0_i32, %c0_i32_0 : i32, i32
  }
  func.func @transform_3(%arg0: i32) -> (i32, i32) {
    %c0_i32 = arith.constant 0 : i32
    %c0_i32_0 = arith.constant 0 : i32
    %c0_i32_1 = arith.constant 0 : i32
    return %c0_i32, %c0_i32_0 : i32, i32
  }
  func.func @transform_4(%arg0: i32) -> (i32, i32) {
    %c0_i32 = arith.constant 0 : i32
    %c0_i32_0 = arith.constant 0 : i32
    %c0_i32_1 = arith.constant 0 : i32
    return %c0_i32, %c0_i32_0 : i32, i32
  }
  func.func @transform_5(%arg0: i32) -> (i32, i32) {
    %c0_i32 = arith.constant 0 : i32
    %c0_i32_0 = arith.constant 0 : i32
    %c0_i32_1 = arith.constant 0 : i32
    return %c0_i32, %c0_i32_0 : i32, i32
  }
  func.func @transform_6(%arg0: i32) -> (i32, i32) {
    %c0_i32 = arith.constant 0 : i32
    %c0_i32_0 = arith.constant 0 : i32
    %c0_i32_1 = arith.constant 0 : i32
    return %c0_i32, %c0_i32_0 : i32, i32
  }
  func.func @transform_7(%arg0: i32) -> (i32, i32) {
    %c0_i32 = arith.constant 0 : i32
    %c0_i32_0 = arith.constant 0 : i32
    %c0_i32_1 = arith.constant 0 : i32
    return %c0_i32, %c0_i32_0 : i32, i32
  }
  func.func @transform_8(%arg0: i32) -> (i32, i32) {
    %c0_i32 = arith.constant 0 : i32
    %c0_i32_0 = arith.constant 0 : i32
    %c0_i32_1 = arith.constant 0 : i32
    return %c0_i32, %c0_i32_0 : i32, i32
  }
  func.func @transform_9(%arg0: i32) -> (i32, i32) {
    %c0_i32 = arith.constant 0 : i32
    %c0_i32_0 = arith.constant 0 : i32
    %c0_i32_1 = arith.constant 0 : i32
    return %c0_i32, %c0_i32_0 : i32, i32
  }
  func.func @transform_10(%arg0: i32) -> (i32, i32) {
    %c0_i32 = arith.constant 0 : i32
    %c0_i32_0 = arith.constant 0 : i32
    return %arg0, %c0_i32 : i32, i32
  }
}

</mosaic_0001>

<llo_original>
// kernel: tpu_custom_call.1
$region0: #{tpu_custom_call.1}
  #allocation0 [shape = 'u32[]', space=smem, size = 0x4, offset = 0x4, fixed_abs, tag = 'smem constant byte address 0x4 - core index']
  #allocation1 [shape = 'u32[72,128]{1,0:T(1,128)}', space=vmem, size = 0x9000, scoped, tag = 'internal scratch']
  %s0 = inlined_call_operand.vmem [shape: f32[16,4], index: 0, kind: input, shape index: {}]
  %s1 = inlined_call_operand.vmem [shape: f32[16,4], index: 1, kind: input, shape index: {}]
  %s2 = inlined_call_operand.vmem [shape: f32[4,4], index: 2, kind: input, shape index: {}]
  %s3 = inlined_call_operand.vmem [shape: f32[1,4], index: 3, kind: input, shape index: {}]
  %s4 = inlined_call_operand.vmem [shape: f32[4,4], index: 4, kind: input, shape index: {}]
  %s5 = inlined_call_operand.vmem [shape: f32[1,4], index: 5, kind: input, shape index: {}]
  %s6 = inlined_call_operand.vmem [shape: f32[4,4], index: 6, kind: input, shape index: {}]
  %s7 = inlined_call_operand.vmem [shape: f32[1,4], index: 7, kind: input, shape index: {}]
  %s8 = inlined_call_operand.vmem [shape: f32[4,4], index: 8, kind: input, shape index: {}]
  %s9 = inlined_call_operand.vmem [shape: f32[1,4], index: 9, kind: input, shape index: {}]
  %s10 = inlined_call_operand.vmem [shape: f32[16,8], index: 10, kind: output, shape index: {}]
  %s11 = sld [smem:[#allocation0]]
  $region73: #{tpu_custom_call.1} parent=0
    _
  %s13 = ssub.s32 1, %s11
  %s14 = scalar_select 0, %s13, %s11
  loop: start=0, step=1, limit=4
  $region2: #{tpu_custom_call.1} parent=0 // loop_pre_header
    _
  $region3: #{tpu_custom_call.1} parent=0 // loop_header
    %s16 = sphi 0, %s20
    %p17 = scmp.ge.s32.totalorder %s16, 4
    %s26 = sphi 0, %s28
    %s29 = sphi 0, %s26
    %s30 = sphi 0, %s29
    %s46 = sphi 0, %s30
    %s52 = sphi 0, %s54
    %s55 = sphi 0, %s52
    %s56 = sphi 0, %s55
    %s72 = sphi 0, %s56
    %s76 = sphi 0, %s76
    %s78 = sphi 0, %s76
    %s79 = sphi 0, %s78
    %s93 = sphi 0, %s79
    %s97 = sphi 0, %s97
    %s99 = sphi 0, %s97
    %s100 = sphi 0, %s99
    %s114 = sphi 0, %s100
    %s118 = sphi 0, %s118
    %s120 = sphi 0, %s118
    %s121 = sphi 0, %s120
    %s135 = sphi 0, %s121
    %s139 = sphi 0, %s139
    %s141 = sphi 0, %s139
    %s142 = sphi 0, %s141
    %s156 = sphi 0, %s142
    %s160 = sphi 0, %s160
    %s162 = sphi 0, %s160
    %s163 = sphi 0, %s162
    %s177 = sphi 0, %s163
    %s181 = sphi 0, %s181
    %s183 = sphi 0, %s181
    %s184 = sphi 0, %s183
    %s198 = sphi 0, %s184
    %s202 = sphi 0, %s202
    %s204 = sphi 0, %s202
    %s205 = sphi 0, %s204
    %s219 = sphi 0, %s205
    %s223 = sphi 0, %s223
    %s225 = sphi 0, %s223
    %s226 = sphi 0, %s225
    %s240 = sphi 0, %s226
    %s246 = sphi 0, %s248
    %s249 = sphi 0, %s246
    %s250 = sphi 0, %s249
    %s266 = sphi 0, %s250
  $region4: #{tpu_custom_call.1} parent=0 // loop_header_branch
    %19 = sbr.rel (%p17) target = $region8
  $region5: #{tpu_custom_call.1} parent=0 // loop_body
    %s21 = ssub.s32 %s16, 1
    %s22 = ssub.s32 %s16, 2
    %s23 = sadd.s32 %s16, 1
    %s24 = ssub.s32 %s16, %s23
    %p25 = scmp.eq.s32.totalorder %s24, 0
    %s27 = sadd.s32 %s26, 1
    %s28 = scalar_select %p25, %s26, %s27
    %p31 = pneg %p25
    %p32 = scmp.eq.s32.totalorder %s16, 1
    %p33 = por %p31, %p32
    %p34 = scmp.ne.s32.totalorder %s26, %s29
    %p35 = scmp.eq.s32.totalorder %s16, 0
    %p36 = por %p34, %p35
    %p37 = scmp.ne.s32.totalorder %s26, %s29
    %p38 = scmp.eq.s32.totalorder %s21, 1
    %p39 = por %p37, %p38
    %p40 = scmp.ne.s32.totalorder %s29, %s30
    %p41 = scmp.eq.s32.totalorder %s21, 0
    %p42 = por %p40, %p41
    %p43 = scmp.ne.s32.totalorder %s29, %s30
    %p44 = scmp.eq.s32.totalorder %s22, 1
    %p45 = por %p43, %p44
    %p47 = scmp.ne.s32.totalorder %s30, %s46
    %p48 = scmp.eq.s32.totalorder %s22, 0
    %p49 = por %p47, %p48
    %s50 = ssub.s32 %s16, %s23
    %p51 = scmp.eq.s32.totalorder %s50, 0
    %s53 = sadd.s32 %s52, 1
    %s54 = scalar_select %p51, %s52, %s53
    %p57 = pneg %p51
    %p58 = scmp.eq.s32.totalorder %s16, 1
    %p59 = por %p57, %p58
    %p60 = scmp.ne.s32.totalorder %s52, %s55
    %p61 = scmp.eq.s32.totalorder %s16, 0
    %p62 = por %p60, %p61
    %p63 = scmp.ne.s32.totalorder %s52, %s55
    %p64 = scmp.eq.s32.totalorder %s21, 1
    %p65 = por %p63, %p64
    %p66 = scmp.ne.s32.totalorder %s55, %s56
    %p67 = scmp.eq.s32.totalorder %s21, 0
    %p68 = por %p66, %p67
    %p69 = scmp.ne.s32.totalorder %s55, %s56
    %p70 = scmp.eq.s32.totalorder %s22, 1
    %p71 = por %p69, %p70
    %p73 = scmp.ne.s32.totalorder %s56, %s72
    %p74 = scmp.eq.s32.totalorder %s22, 0
    %p75 = por %p73, %p74
    %s77 = sadd.s32 %s76, 1
    %p80 = scmp.eq.s32.totalorder %s16, 1
    %p81 = scmp.ne.s32.totalorder %s76, %s78
    %p82 = scmp.eq.s32.totalorder %s16, 0
    %p83 = por %p81, %p82
    %p84 = scmp.ne.s32.totalorder %s76, %s78
    %p85 = scmp.eq.s32.totalorder %s21, 1
    %p86 = por %p84, %p85
    %p87 = scmp.ne.s32.totalorder %s78, %s79
    %p88 = scmp.eq.s32.totalorder %s21, 0
    %p89 = por %p87, %p88
    %p90 = scmp.ne.s32.totalorder %s78, %s79
    %p91 = scmp.eq.s32.totalorder %s22, 1
    %p92 = por %p90, %p91
    %p94 = scmp.ne.s32.totalorder %s79, %s93
    %p95 = scmp.eq.s32.totalorder %s22, 0
    %p96 = por %p94, %p95
    %s98 = sadd.s32 %s97, 1
    %p101 = scmp.eq.s32.totalorder %s16, 1
    %p102 = scmp.ne.s32.totalorder %s97, %s99
    %p103 = scmp.eq.s32.totalorder %s16, 0
    %p104 = por %p102, %p103
    %p105 = scmp.ne.s32.totalorder %s97, %s99
    %p106 = scmp.eq.s32.totalorder %s21, 1
    %p107 = por %p105, %p106
    %p108 = scmp.ne.s32.totalorder %s99, %s100
    %p109 = scmp.eq.s32.totalorder %s21, 0
    %p110 = por %p108, %p109
    %p111 = scmp.ne.s32.totalorder %s99, %s100
    %p112 = scmp.eq.s32.totalorder %s22, 1
    %p113 = por %p111, %p112
    %p115 = scmp.ne.s32.totalorder %s100, %s114
    %p116 = scmp.eq.s32.totalorder %s22, 0
    %p117 = por %p115, %p116
    %s119 = sadd.s32 %s118, 1
    %p122 = scmp.eq.s32.totalorder %s16, 1
    %p123 = scmp.ne.s32.totalorder %s118, %s120
    %p124 = scmp.eq.s32.totalorder %s16, 0
    %p125 = por %p123, %p124
    %p126 = scmp.ne.s32.totalorder %s118, %s120
    %p127 = scmp.eq.s32.totalorder %s21, 1
    %p128 = por %p126, %p127
    %p129 = scmp.ne.s32.totalorder %s120, %s121
    %p130 = scmp.eq.s32.totalorder %s21, 0
    %p131 = por %p129, %p130
    %p132 = scmp.ne.s32.totalorder %s120, %s121
    %p133 = scmp.eq.s32.totalorder %s22, 1
    %p134 = por %p132, %p133
    %p136 = scmp.ne.s32.totalorder %s121, %s135
    %p137 = scmp.eq.s32.totalorder %s22, 0
    %p138 = por %p136, %p137
    %s140 = sadd.s32 %s139, 1
    %p143 = scmp.eq.s32.totalorder %s16, 1
    %p144 = scmp.ne.s32.totalorder %s139, %s141
    %p145 = scmp.eq.s32.totalorder %s16, 0
    %p146 = por %p144, %p145
    %p147 = scmp.ne.s32.totalorder %s139, %s141
    %p148 = scmp.eq.s32.totalorder %s21, 1
    %p149 = por %p147, %p148
    %p150 = scmp.ne.s32.totalorder %s141, %s142
    %p151 = scmp.eq.s32.totalorder %s21, 0
    %p152 = por %p150, %p151
    %p153 = scmp.ne.s32.totalorder %s141, %s142
    %p154 = scmp.eq.s32.totalorder %s22, 1
    %p155 = por %p153, %p154
    %p157 = scmp.ne.s32.totalorder %s142, %s156
    %p158 = scmp.eq.s32.totalorder %s22, 0
    %p159 = por %p157, %p158
    %s161 = sadd.s32 %s160, 1
    %p164 = scmp.eq.s32.totalorder %s16, 1
    %p165 = scmp.ne.s32.totalorder %s160, %s162
    %p166 = scmp.eq.s32.totalorder %s16, 0
    %p167 = por %p165, %p166
    %p168 = scmp.ne.s32.totalorder %s160, %s162
    %p169 = scmp.eq.s32.totalorder %s21, 1
    %p170 = por %p168, %p169
    %p171 = scmp.ne.s32.totalorder %s162, %s163
    %p172 = scmp.eq.s32.totalorder %s21, 0
    %p173 = por %p171, %p172
    %p174 = scmp.ne.s32.totalorder %s162, %s163
    %p175 = scmp.eq.s32.totalorder %s22, 1
    %p176 = por %p174, %p175
    %p178 = scmp.ne.s32.totalorder %s163, %s177
    %p179 = scmp.eq.s32.totalorder %s22, 0
    %p180 = por %p178, %p179
    %s182 = sadd.s32 %s181, 1
    %p185 = scmp.eq.s32.totalorder %s16, 1
    %p186 = scmp.ne.s32.totalorder %s181, %s183
    %p187 = scmp.eq.s32.totalorder %s16, 0
    %p188 = por %p186, %p187
    %p189 = scmp.ne.s32.totalorder %s181, %s183
    %p190 = scmp.eq.s32.totalorder %s21, 1
    %p191 = por %p189, %p190
    %p192 = scmp.ne.s32.totalorder %s183, %s184
    %p193 = scmp.eq.s32.totalorder %s21, 0
    %p194 = por %p192, %p193
    %p195 = scmp.ne.s32.totalorder %s183, %s184
    %p196 = scmp.eq.s32.totalorder %s22, 1
    %p197 = por %p195, %p196
    %p199 = scmp.ne.s32.totalorder %s184, %s198
    %p200 = scmp.eq.s32.totalorder %s22, 0
    %p201 = por %p199, %p200
    %s203 = sadd.s32 %s202, 1
    %p206 = scmp.eq.s32.totalorder %s16, 1
    %p207 = scmp.ne.s32.totalorder %s202, %s204
    %p208 = scmp.eq.s32.totalorder %s16, 0
    %p209 = por %p207, %p208
    %p210 = scmp.ne.s32.totalorder %s202, %s204
    %p211 = scmp.eq.s32.totalorder %s21, 1
    %p212 = por %p210, %p211
    %p213 = scmp.ne.s32.totalorder %s204, %s205
    %p214 = scmp.eq.s32.totalorder %s21, 0
    %p215 = por %p213, %p214
    %p216 = scmp.ne.s32.totalorder %s204, %s205
    %p217 = scmp.eq.s32.totalorder %s22, 1
    %p218 = por %p216, %p217
    %p220 = scmp.ne.s32.totalorder %s205, %s219
    %p221 = scmp.eq.s32.totalorder %s22, 0
    %p222 = por %p220, %p221
    %s224 = sadd.s32 %s223, 1
    %p227 = scmp.eq.s32.totalorder %s16, 1
    %p228 = scmp.ne.s32.totalorder %s223, %s225
    %p229 = scmp.eq.s32.totalorder %s16, 0
    %p230 = por %p228, %p229
    %p231 = scmp.ne.s32.totalorder %s223, %s225
    %p232 = scmp.eq.s32.totalorder %s21, 1
    %p233 = por %p231, %p232
    %p234 = scmp.ne.s32.totalorder %s225, %s226
    %p235 = scmp.eq.s32.totalorder %s21, 0
    %p236 = por %p234, %p235
    %p237 = scmp.ne.s32.totalorder %s225, %s226
    %p238 = scmp.eq.s32.totalorder %s22, 1
    %p239 = por %p237, %p238
    %p241 = scmp.ne.s32.totalorder %s226, %s240
    %p242 = scmp.eq.s32.totalorder %s22, 0
    %p243 = por %p241, %p242
    %s244 = ssub.s32 %s16, %s23
    %p245 = scmp.eq.s32.totalorder %s244, 0
    %s247 = sadd.s32 %s246, 1
    %s248 = scalar_select %p245, %s246, %s247
    %p251 = pneg %p245
    %p252 = scmp.eq.s32.totalorder %s16, 1
    %p253 = por %p251, %p252
    %p254 = scmp.ne.s32.totalorder %s246, %s249
    %p255 = scmp.eq.s32.totalorder %s16, 0
    %p256 = por %p254, %p255
    %p257 = scmp.ne.s32.totalorder %s246, %s249
    %p258 = scmp.eq.s32.totalorder %s21, 1
    %p259 = por %p257, %p258
    %p260 = scmp.ne.s32.totalorder %s249, %s250
    %p261 = scmp.eq.s32.totalorder %s21, 0
    %p262 = por %p260, %p261
    %p263 = scmp.ne.s32.totalorder %s249, %s250
    %p264 = scmp.eq.s32.totalorder %s22, 1
    %p265 = por %p263, %p264
    %p267 = scmp.ne.s32.totalorder %s250, %s266
    %p268 = scmp.eq.s32.totalorder %s22, 0
    %p269 = por %p267, %p268
    %p270 = scmp.le.s32.totalorder 1, %s16
    %p271 = scmp.lt.s32.totalorder %s16, 3
    %p272 = pnand %p270, %p271
    %p273 = pneg %p272
    // Predicated region
    $region9: #{tpu_custom_call.1} parent=5 // pred_check
      _
    $region10: #{tpu_custom_call.1} parent=5 // pred_check_branch
      %275 = sbr.rel (%p272) target = $region12
    $region11: #{tpu_custom_call.1} parent=5 // pred_region
      %s276 = ssub.s32 %s16, 1
      // Predicated region
      $region13: #{tpu_custom_call.1} parent=11 // pred_check
        %p277 = pneg %p89
      $region14: #{tpu_custom_call.1} parent=11 // pred_check_branch
        %279 = sbr.rel (%p277) target = $region16
      $region15: #{tpu_custom_call.1} parent=11 // pred_region
        _
      $region16: #{tpu_custom_call.1} parent=11 // pred_fallthru
        _
      // Predicated region
      $region17: #{tpu_custom_call.1} parent=11 // pred_check
        %p280 = pneg %p110
      $region18: #{tpu_custom_call.1} parent=11 // pred_check_branch
        %282 = sbr.rel (%p280) target = $region20
      $region19: #{tpu_custom_call.1} parent=11 // pred_region
        _
      $region20: #{tpu_custom_call.1} parent=11 // pred_fallthru
        _
      // Predicated region
      $region21: #{tpu_custom_call.1} parent=11 // pred_check
        %p283 = pneg %p131
      $region22: #{tpu_custom_call.1} parent=11 // pred_check_branch
        %285 = sbr.rel (%p283) target = $region24
      $region23: #{tpu_custom_call.1} parent=11 // pred_region
        _
      $region24: #{tpu_custom_call.1} parent=11 // pred_fallthru
        _
      // Predicated region
      $region25: #{tpu_custom_call.1} parent=11 // pred_check
        %p286 = pneg %p152
      $region26: #{tpu_custom_call.1} parent=11 // pred_check_branch
        %288 = sbr.rel (%p286) target = $region28
      $region27: #{tpu_custom_call.1} parent=11 // pred_region
        _
      $region28: #{tpu_custom_call.1} parent=11 // pred_fallthru
        _
      // Predicated region
      $region29: #{tpu_custom_call.1} parent=11 // pred_check
        %p289 = pneg %p173
      $region30: #{tpu_custom_call.1} parent=11 // pred_check_branch
        %291 = sbr.rel (%p289) target = $region32
      $region31: #{tpu_custom_call.1} parent=11 // pred_region
        _
      $region32: #{tpu_custom_call.1} parent=11 // pred_fallthru
        _
      // Predicated region
      $region33: #{tpu_custom_call.1} parent=11 // pred_check
        %p292 = pneg %p194
      $region34: #{tpu_custom_call.1} parent=11 // pred_check_branch
        %294 = sbr.rel (%p292) target = $region36
      $region35: #{tpu_custom_call.1} parent=11 // pred_region
        _
      $region36: #{tpu_custom_call.1} parent=11 // pred_fallthru
        _
      // Predicated region
      $region37: #{tpu_custom_call.1} parent=11 // pred_check
        %p295 = pneg %p215
      $region38: #{tpu_custom_call.1} parent=11 // pred_check_branch
        %297 = sbr.rel (%p295) target = $region40
      $region39: #{tpu_custom_call.1} parent=11 // pred_region
        _
      $region40: #{tpu_custom_call.1} parent=11 // pred_fallthru
        _
      // Predicated region
      $region41: #{tpu_custom_call.1} parent=11 // pred_check
        %p298 = pneg %p236
      $region42: #{tpu_custom_call.1} parent=11 // pred_check_branch
        %300 = sbr.rel (%p298) target = $region44
      $region43: #{tpu_custom_call.1} parent=11 // pred_region
        _
      $region44: #{tpu_custom_call.1} parent=11 // pred_fallthru
        _
    $region12: #{tpu_custom_call.1} parent=5 // pred_fallthru
      _
    %p301 = scmp.lt.s32.totalorder %s16, 2
    // Predicated region
    $region45: #{tpu_custom_call.1} parent=5 // pred_check
      %p302 = pneg %p301
    $region46: #{tpu_custom_call.1} parent=5 // pred_check_branch
      %304 = sbr.rel (%p302) target = $region48
    $region47: #{tpu_custom_call.1} parent=5 // pred_region
      // Predicated region
      $region49: #{tpu_custom_call.1} parent=47 // pred_check
        %p305 = pneg %p36
      $region50: #{tpu_custom_call.1} parent=47 // pred_check_branch
        %307 = sbr.rel (%p305) target = $region52
      $region51: #{tpu_custom_call.1} parent=47 // pred_region
        %p308 = scmp.lt.s32.totalorder %s16, 1
        %s309 = scalar_select %p308, %s16, 1
        %s310 = smul.addr %s309, 8
        %s311 = scalar_lea.vmem %s0, %s310
      $region52: #{tpu_custom_call.1} parent=47 // pred_fallthru
        _
      // Predicated region
      $region53: #{tpu_custom_call.1} parent=47 // pred_check
        %p312 = pneg %p62
      $region54: #{tpu_custom_call.1} parent=47 // pred_check_branch
        %314 = sbr.rel (%p312) target = $region56
      $region55: #{tpu_custom_call.1} parent=47 // pred_region
        %p315 = scmp.lt.s32.totalorder %s16, 1
        %s316 = scalar_select %p315, %s16, 1
        %s317 = smul.addr %s316, 8
        %s318 = scalar_lea.vmem %s1, %s317
      $region56: #{tpu_custom_call.1} parent=47 // pred_fallthru
        _
    $region48: #{tpu_custom_call.1} parent=5 // pred_fallthru
      _
    %p319 = scmp.le.s32.totalorder 1, %s16
    %p320 = scmp.lt.s32.totalorder %s16, 3
    %p321 = pnand %p319, %p320
    %p322 = pneg %p321
    // Predicated region
    $region57: #{tpu_custom_call.1} parent=5 // pred_check
      _
    $region58: #{tpu_custom_call.1} parent=5 // pred_check_branch
      %324 = sbr.rel (%p321) target = $region60
    $region59: #{tpu_custom_call.1} parent=5 // pred_region
      %s325 = ssub.s32 %s16, 1
      %p326 = scmp.lt.s32.totalorder %s21, 1
      %s327 = scalar_select %p326, %s21, 1
      %s328 = smul.addr %s327, 8
      %s329 = scalar_lea.vmem %s0, %s328
      %p330 = pneg %p42
      %p331 = pneg %p39
      %p332 = scmp.lt.s32.totalorder %s21, 1
      %s333 = scalar_select %p332, %s21, 1
      %s334 = smul.addr %s333, 8
      %s335 = scalar_lea.vmem %s1, %s334
      %p336 = pneg %p68
      %p337 = pneg %p65
      %p338 = pneg %p89
      %p339 = pneg %p86
      %p340 = pneg %p110
      %p341 = pneg %p107
      %p342 = pneg %p131
      %p343 = pneg %p128
      %p344 = pneg %p152
      %p345 = pneg %p149
      %p346 = pneg %p173
      %p347 = pneg %p170
      %p348 = pneg %p194
      %p349 = pneg %p191
      %p350 = pneg %p215
      %p351 = pneg %p212
      %p352 = pneg %p236
      %p353 = pneg %p233
      %p354 = pneg %p262
      %p355 = pneg %p259
      %p356 = scmp.lt.s32.totalorder %s21, 1
      %s357 = scalar_select %p356, %s21, 1
      %s358 = smul.addr %s357, 8
      %s359 = scalar_lea.vmem %s10, %s358
      %p360 = scmp.lt.s32.totalorder %s21, 1
      %s361 = scalar_select %p360, %s21, 1
      %s362 = smul.addr %s361, 8
      %s363 = scalar_lea.vmem %s0, %s362
      %p364 = scmp.lt.s32.totalorder %s21, 1
      %s365 = scalar_select %p364, %s21, 1
      %s366 = smul.addr %s365, 8
      %s367 = scalar_lea.vmem %s1, %s366
      %p368 = scmp.lt.s32.totalorder %s21, 1
      %s369 = scalar_select %p368, %s21, 1
      %s370 = smul.addr %s369, 8
      %s371 = scalar_lea.vmem %s10, %s370
      %v372 = vld [vmem:[%s363] sm:$0xff]
      %v373 = vld [vmem:[%s367] sm:$0xff]
      %v374 = vld [vmem:[%s2] sm:$0xf]
      %v375 = vld [vmem:[%s3] sm:$0x1]
      %v377 = vperm.slane %v375, 0
      %vm379 = vcmask 31744
      %v381 = vsel %vm379, %v372, 0
      %vm383 = vcmask 1043456
      %v385 = vsel %vm383, %v374, 0
      %387 = vmatpush.msra.mxu0 0.0
      %388 = vmatpush.msra.mxu0 0.0
      %389 = vmatpush.msra.mxu0 0.0
      %390 = vmatpush.msra.mxu0 0.0
      %391 = vmatpush.msra.mxu0 0.0
      %392 = vmatpush.msra.mxu0 0.0
      %393 = vmatpush.msra.mxu0 0.0
      %394 = vmatpush.msra.mxu0 0.0
      %395 = vmatpush.msra.mxu0 0.0
      %396 = vmatpush.msra.mxu0 0.0
      %397 = vmatpush.msra.mxu0 0.0
      %398 = vmatpush.msra.mxu0 0.0
      %399 = vmatpush.msra.mxu0 0.0
      %400 = vmatpush.msra.mxu0 0.0
      %401 = vmatpush.msra.mxu0 0.0
      %402 = vmatpush.msra.mxu0 %v385
      %403 = vmatmul.f32.gmra.mxu0 %v381
      %v404 = vpop.f32.mrf.mxu0
      %v405 = vadd.f32 %v377, %v404
      %406 = vdwg.mxu0
      %v407 = vmax.f32 %v405, 0.0
      %v408 = vld [vmem:[%s4] sm:$0xf]
      %v409 = vld [vmem:[%s5] sm:$0x1]
      %v411 = vperm.slane %v409, 0
      %v414 = vsel %vm379, %v407, 0
      %v417 = vsel %vm383, %v408, 0
      %419 = vmatpush.msra.mxu0 0.0
      %420 = vmatpush.msra.mxu0 0.0
      %421 = vmatpush.msra.mxu0 0.0
      %422 = vmatpush.msra.mxu0 0.0
      %423 = vmatpush.msra.mxu0 0.0
      %424 = vmatpush.msra.mxu0 0.0
      %425 = vmatpush.msra.mxu0 0.0
      %426 = vmatpush.msra.mxu0 0.0
      %427 = vmatpush.msra.mxu0 0.0
      %428 = vmatpush.msra.mxu0 0.0
      %429 = vmatpush.msra.mxu0 0.0
      %430 = vmatpush.msra.mxu0 0.0
      %431 = vmatpush.msra.mxu0 0.0
      %432 = vmatpush.msra.mxu0 0.0
      %433 = vmatpush.msra.mxu0 0.0
      %434 = vmatpush.msra.mxu0 %v417
      %435 = vmatmul.f32.gmra.mxu0 %v414
      %v436 = vpop.f32.mrf.mxu0
      %v437 = vadd.f32 %v411, %v436
      %438 = vdwg.mxu0
      %v439 = vmax.f32 %v437, 0.0
      %v440 = vld [vmem:[%s6] sm:$0xf]
      %v441 = vld [vmem:[%s7] sm:$0x1]
      %v443 = vperm.slane %v441, 0
      %v446 = vsel %vm379, %v439, 0
      %v449 = vsel %vm383, %v440, 0
      %451 = vmatpush.msra.mxu0 0.0
      %452 = vmatpush.msra.mxu0 0.0
      %453 = vmatpush.msra.mxu0 0.0
      %454 = vmatpush.msra.mxu0 0.0
      %455 = vmatpush.msra.mxu0 0.0
      %456 = vmatpush.msra.mxu0 0.0
      %457 = vmatpush.msra.mxu0 0.0
      %458 = vmatpush.msra.mxu0 0.0
      %459 = vmatpush.msra.mxu0 0.0
      %460 = vmatpush.msra.mxu0 0.0
      %461 = vmatpush.msra.mxu0 0.0
      %462 = vmatpush.msra.mxu0 0.0
      %463 = vmatpush.msra.mxu0 0.0
      %464 = vmatpush.msra.mxu0 0.0
      %465 = vmatpush.msra.mxu0 0.0
      %466 = vmatpush.msra.mxu0 %v449
      %467 = vmatmul.f32.gmra.mxu0 %v446
      %v468 = vpop.f32.mrf.mxu0
      %v469 = vadd.f32 %v443, %v468
      %470 = vdwg.mxu0
      %v471 = vld [vmem:[%s8] sm:$0xf]
      %v472 = vld [vmem:[%s9] sm:$0x1]
      %v474 = vperm.slane %v472, 0
      %v477 = vsel %vm383, %v471, 0
      %479 = vmatpush.msra.mxu0 0.0
      %480 = vmatpush.msra.mxu0 0.0
      %481 = vmatpush.msra.mxu0 0.0
      %482 = vmatpush.msra.mxu0 0.0
      %483 = vmatpush.msra.mxu0 0.0
      %484 = vmatpush.msra.mxu0 0.0
      %485 = vmatpush.msra.mxu0 0.0
      %486 = vmatpush.msra.mxu0 0.0
      %487 = vmatpush.msra.mxu0 0.0
      %488 = vmatpush.msra.mxu0 0.0
      %489 = vmatpush.msra.mxu0 0.0
      %490 = vmatpush.msra.mxu0 0.0
      %491 = vmatpush.msra.mxu0 0.0
      %492 = vmatpush.msra.mxu0 0.0
      %493 = vmatpush.msra.mxu0 0.0
      %494 = vmatpush.msra.mxu0 %v477
      %495 = vmatmul.f32.gmra.mxu0 %v446
      %v496 = vpop.f32.mrf.mxu0
      %v497 = vadd.f32 %v474, %v496
      %498 = vdwg.mxu0
      %v499 = vtanh.pop %v469
      %v500 = vmul.f32 %v499, 0.1
      %v501 = vmul.f32 %v500, 1.442695
      %v502 = vpow.pop %v501
      %v503 = vmul.f32 %v373, %v502
      %v504 = vadd.f32 %v503, %v497
      %505 = vst.msk [vmem:[%s371] sm:$0xff] %vm379, %v504
      %506 = vrot.lane.b32.xlu0 %v372, 4
      %v507 = vpop.permute.xlu0 %506
      %vm509 = vcmask 64544
      %510 = vst.msk [vmem:[%s371] sm:$0xff] %vm509, %v507
      %p511 = scmp.lt.s32.totalorder %s21, 1
      %s512 = scalar_select %p511, %s21, 1
      %s513 = smul.addr %s512, 8
      %s514 = scalar_lea.vmem %s10, %s513
      // Predicated region
      $region61: #{tpu_custom_call.1} parent=59 // pred_check
        %p515 = pneg %p259
      $region62: #{tpu_custom_call.1} parent=59 // pred_check_branch
        %517 = sbr.rel (%p515) target = $region64
      $region63: #{tpu_custom_call.1} parent=59 // pred_region
        _
      $region64: #{tpu_custom_call.1} parent=59 // pred_fallthru
        _
    $region60: #{tpu_custom_call.1} parent=5 // pred_fallthru
      _
    %p518 = scmp.le.s32.totalorder 2, %s16
    // Predicated region
    $region65: #{tpu_custom_call.1} parent=5 // pred_check
      %p519 = pneg %p518
    $region66: #{tpu_custom_call.1} parent=5 // pred_check_branch
      %521 = sbr.rel (%p519) target = $region68
    $region67: #{tpu_custom_call.1} parent=5 // pred_region
      %s522 = ssub.s32 %s16, 2
      // Predicated region
      $region69: #{tpu_custom_call.1} parent=67 // pred_check
        %p523 = pneg %p265
      $region70: #{tpu_custom_call.1} parent=67 // pred_check_branch
        %525 = sbr.rel (%p523) target = $region72
      $region71: #{tpu_custom_call.1} parent=67 // pred_region
        %p526 = scmp.lt.s32.totalorder %s22, 1
        %s527 = scalar_select %p526, %s22, 1
        %s528 = smul.addr %s527, 8
        %s529 = scalar_lea.vmem %s10, %s528
      $region72: #{tpu_custom_call.1} parent=67 // pred_fallthru
        _
    $region68: #{tpu_custom_call.1} parent=5 // pred_fallthru
      _
  $region6: #{tpu_custom_call.1} parent=0 // loop_footer
    %s20 = sadd.s32 1, %s16
  $region7: #{tpu_custom_call.1} parent=0 // loop_footer_branch
    %15 = sbr.rel target = $region3
  $region8: #{tpu_custom_call.1} parent=0 // loop_exit
    _

</llo_original>
